<compile_context>
chip_gen: v7x
topology: tpu7x:2x2x1
jax: 0.10.0
libtpu: 0.0.40
codegen_flags: <defaults>
</compile_context>

<pallas_src>
import numpy as np
import jax
import jax.numpy as jnp
from jax.experimental import pallas as pl
from jax.experimental.pallas import tpu as pltpu


def _shift_lanes_left(v, k):
    """result[:, l] = v[:, l + k] for l < L - k (wrapped lanes are never used)."""
    return jnp.concatenate([v[:, k:], v[:, :k]], axis=1)


def _make_kernel(Wi, n_terms):
    """Wi = pooled image width (2*Wo); n_terms = bf16 split terms for the gather."""

    def kernel(x_ref, sel_ref, mask_ref, o_ref):
        # x_ref   : (tm, L)  packed row strips:  [top_s | bot_s] x r strips
        # sel_ref : (L, No)  0/1 selector, lane s*2*Wi + 2j -> output lane s*Wo + j
        # mask_ref: (tm, L)  bf16 {0,1}, 1 -> avg pooling for that window
        # o_ref   : (tm, No)
        x = x_ref[...].astype(jnp.float32)
        # Vertical partner: image row 2i+1 sits Wi lanes to the right of row 2i.
        xv = _shift_lanes_left(x, Wi)
        vsum = x + xv
        vmax = jnp.maximum(x, xv)

        use_avg = mask_ref[...] != 0
        # Resolve max-vs-avg BEFORE the horizontal combine / compaction so only
        # one array reaches the MXU (mask is constant over each 2x2 window).
        pre = jnp.where(use_avg, 0.25 * vsum, vmax)
        # Horizontal partner: column 2j+1 next to column 2j.
        ph = _shift_lanes_left(pre, 1)
        comb = jnp.where(use_avg, pre + ph, jnp.maximum(pre, ph))

        # Compaction: gather lane s*2*Wi + 2j -> output lane s*Wo + j with a 0/1
        # selector matmul.  comb is split into bf16 terms so every dot is a
        # single MXU pass; 3 terms reproduce f32 exactly for finite values.
        # NOTE(correctness): non-finite inputs contaminate their row strip.
        sel = sel_ref[...]
        acc = None
        rem = comb
        for t in range(n_terms):
            term = rem.astype(jnp.bfloat16)
            part = jnp.dot(term, sel, preferred_element_type=jnp.float32)
            acc = part if acc is None else acc + part
            if t + 1 < n_terms:
                rem = rem - term.astype(jnp.float32)
        o_ref[...] = acc.astype(o_ref.dtype)

    return kernel


def _pick_pack(Ho, Wo):
    """Packing factor r (# of window-row strips per kernel row).  r | Ho.

    Chosen so the output lane width r*Wo reaches ~128 (lane-dense stores) while
    keeping the dense selector small."""
    if Wo >= 128:
        return 1
    best = 1
    for r in range(1, Ho + 1):
        if Ho % r:
            continue
        if r * Wo > 512:            # keep selector / output width bounded
            break
        best = r
        if r * Wo >= 128:
            break
    return best


def _pick_tile_rows(m_rows, hp, row_bytes, block_bytes):
    """Tile row count for the (m_rows, L) packed view.

    Candidates are either multiples of hp (whole channel groups per tile) or
    divisors of hp (sub-group tiles for very large channels), all multiples of
    8 (sublane alignment).  Largest candidate within the byte budget wins;
    prefer >= 2 grid steps so megacore has work on both TensorCores."""
    bc = m_rows // hp
    target = max(1, int(block_bytes) // max(1, int(row_bytes)))
    cands = set()
    for d in range(8, hp + 1, 8):               # sub-group tiles (d | hp)
        if hp % d == 0:
            cands.add(d)
    for t in range(1, bc + 1):                  # whole-group tiles
        if (t * hp) % 8 == 0:
            cands.add(t * hp)
    if not cands:
        return m_rows                           # tiny / pathological: one block
    below = [c for c in cands if c <= target]
    tm = max(below) if below else min(cands)
    if tm >= m_rows and m_rows >= 16:           # allow >= 2 grid steps
        smaller = [c for c in cands if c <= m_rows // 2]
        if smaller:
            tm = max(smaller)
    return min(tm, m_rows)


def eapool(x, gene, *, block_bytes=2 << 20):
    """EaPool forward.  x: (B, C, H, W), gene: (Ho*Wo,) ints (0=max, 1=avg).

    Returns (B, C, H//2, W//2) in x.dtype."""
    x = jnp.asarray(x)
    gene = jnp.asarray(gene)
    B, C, H, W = x.shape
    Ho, Wo = H // 2, W // 2
    if Ho == 0 or Wo == 0:
        return jnp.zeros((B, C, Ho, Wo), x.dtype)
    if H != 2 * Ho or W != 2 * Wo:
        # PyTorch stride-2 windows drop the trailing odd row/col.
        # TODO(synk): this slice materializes one HBM copy for odd H/W.
        x = x[:, :, : 2 * Ho, : 2 * Wo]

    Wi = 2 * Wo                      # pooled image width
    BC = B * C
    r = _pick_pack(Ho, Wo)           # strips packed per kernel row (r | Ho)
    Hp = Ho // r                     # kernel rows per (b, c) channel group
    L = 2 * r * Wi                   # lanes per kernel row
    No = r * Wo                      # output lanes per kernel row
    Mr = BC * Hp                     # total kernel rows

    # Free, contiguous reshape: kernel row (g, q) holds r strips, strip s =
    # image rows (2*(q*r+s), 2*(q*r+s)+1) of channel g, concatenated on lanes.
    x_r = x.reshape(Mr, L)

    # 0/1 even-lane selector: lane s*2*Wi + 2j -> output lane s*Wo + j.
    sel_np = np.zeros((L, No), np.float32)
    s_idx = np.repeat(np.arange(r), Wo)
    j_idx = np.tile(np.arange(Wo), r)
    sel_np[s_idx * 2 * Wi + 2 * j_idx, s_idx * Wo + j_idx] = 1.0
    sel = jnp.asarray(sel_np, dtype=jnp.bfloat16)
    # TODO(synk): for very wide images (Wo >> 128) a banded per-chunk selector
    # would avoid the O(Wo^2) dense-selector MXU cost.

    # Gene mask in the packed lane layout, one group period (Hp, L), bf16.
    gene_avg = gene.reshape(Ho, Wo) == 1
    lane = np.arange(L)
    s_of = lane // (2 * Wi)
    j_of = (lane % (2 * Wi)) % Wi // 2
    i_of = np.arange(Hp)[:, None] * r + s_of[None, :]           # (Hp, L)
    pat = gene_avg[i_of, j_of[None, :]].astype(jnp.bfloat16)    # (Hp, L)

    itemsize = x.dtype.itemsize
    tm = _pick_tile_rows(Mr, Hp, L * itemsize, block_bytes)
    grid = (pl.cdiv(Mr, tm),)

    if tm % Hp == 0:
        # Tiles cover whole channel groups: one tile worth of mask, resident.
        mask_arr = jnp.tile(pat, (tm // Hp, 1))
        mask_map = lambda i: (0, 0)
    else:
        # Sub-group tiles (tm | Hp): phase cycles across grid steps.
        period = Hp // tm
        mask_arr = pat
        mask_map = lambda i: (i % period, 0)

    if x.dtype == jnp.float32:
        n_terms = 3                  # exact f32 gather via 3 single-pass bf16 dots
    elif x.dtype == jnp.float16:
        n_terms = 2
    else:
        n_terms = 1                  # bf16 and friends: single pass

    cost = pl.CostEstimate(
        flops=int(Mr * (8 * L + 2 * n_terms * L * No)),
        transcendentals=0,
        bytes_accessed=int(Mr * L * itemsize + Mr * No * itemsize
                           + mask_arr.size * 2 + sel.size * 2),
    )

    out_r = pl.pallas_call(
        _make_kernel(Wi, n_terms),
        out_shape=jax.ShapeDtypeStruct((Mr, No), x.dtype),
        grid=grid,
        in_specs=[
            pl.BlockSpec((tm, L), lambda i: (i, 0)),       # x tile (pipelined)
            pl.BlockSpec((L, No), lambda i: (0, 0)),       # selector (resident)
            pl.BlockSpec((tm, L), mask_map),               # gene mask
        ],
        out_specs=pl.BlockSpec((tm, No), lambda i: (i, 0)),
        compiler_params=pltpu.CompilerParams(
            dimension_semantics=("parallel",),
            vmem_limit_bytes=48 * 1024 * 1024,
        ),
        cost_estimate=cost,
    )(x_r, sel, mask_arr)

    # Free reshape back: row (g, q), lane s*Wo + j  <->  output (b, c, q*r+s, j).
    return out_r.reshape(B, C, Ho, Wo)


def eapool_reference(x, gene):
    """Pure-JAX reference mirroring the PyTorch per-window loop."""
    B, C, H, W = x.shape
    Ho, Wo = H // 2, W // 2
    xw = x[:, :, : 2 * Ho, : 2 * Wo].astype(jnp.float32).reshape(B, C, Ho, 2, Wo, 2)
    mx = jnp.max(xw, axis=(3, 5))
    avg = jnp.mean(xw, axis=(3, 5))
    use_avg = (gene.reshape(Ho, Wo) == 1)[None, None, :, :]
    return jnp.where(use_avg, avg, mx)


if __name__ == "__main__":
    key = jax.random.PRNGKey(0)
    k1, k2, k3 = jax.random.split(key, 3)

    # Test 1: small shape consistent with the module (single grid step).
    B, C, H, W = 2, 4, 16, 16
    x = jax.random.normal(k1, (B, C, H, W), dtype=jnp.float32)
    Ho, Wo = H // 2, W // 2
    gene = (jnp.arange(Ho * Wo) % 2).astype(jnp.int32)     # alternating max / avg
    out = jax.block_until_ready(eapool(x, gene))
    ref = eapool_reference(x, gene)
    assert out.shape == (B, C, Ho, Wo)
    np.testing.assert_allclose(np.asarray(out), np.asarray(ref),
                               rtol=1e-5, atol=1e-6)

    # Test 2: small block budget -> multi-step pipelined grid, random genes.
    B2, C2, H2, W2 = 4, 8, 32, 32
    x2 = jax.random.normal(k2, (B2, C2, H2, W2), dtype=jnp.float32)
    Ho2, Wo2 = H2 // 2, W2 // 2
    gene2 = jax.random.bernoulli(k3, 0.5, (Ho2 * Wo2,)).astype(jnp.int32)
    out2 = jax.block_until_ready(eapool(x2, gene2, block_bytes=1 << 15))
    ref2 = eapool_reference(x2, gene2)
    np.testing.assert_allclose(np.asarray(out2), np.asarray(ref2),
                               rtol=1e-5, atol=1e-6)

    # Test 3: bf16 inputs exercise the single-pass MXU path.
    x3 = x2.astype(jnp.bfloat16)
    out3 = jax.block_until_ready(eapool(x3, gene2))
    ref3 = eapool_reference(x3, gene2)
    np.testing.assert_allclose(np.asarray(out3, dtype=np.float32),
                               np.asarray(ref3), rtol=1e-2, atol=1e-2)

    print("KERNEL_OK")
</pallas_src>

<mosaic_0001>
module attributes {stable_mosaic.version = 11 : i64} {
  func.func @kernel(%arg0: i32, %arg1: memref<8x256xf32, #tpu.memory_space<vmem>>, %arg2: memref<256x64xbf16, #tpu.memory_space<vmem>>, %arg3: memref<8x256xbf16, #tpu.memory_space<vmem>>, %arg4: memref<8x64xf32, #tpu.memory_space<vmem>>) attributes {dimension_semantics = [#tpu.dimension_semantics<parallel>], iteration_bounds = array<i64: 1>, scalar_prefetch = 0 : i64, scratch_operands = 0 : i64, tpu.core_type = #tpu.core_type<tc>, window_params = [{transform_indices = @transform_0, window_bounds = array<i64: 8, 256>}, {pipeline_mode = #tpu.pipeline_mode<synchronous>, transform_indices = @transform_1, window_bounds = array<i64: 256, 64>}, {pipeline_mode = #tpu.pipeline_mode<synchronous>, transform_indices = @transform_2, window_bounds = array<i64: 8, 256>}, {transform_indices = @transform_3, window_bounds = array<i64: 8, 64>}]} {
    %c0 = arith.constant 0 : index
    %c0_0 = arith.constant 0 : index
    %0 = vector.load %arg1[%c0, %c0_0] : memref<8x256xf32, #tpu.memory_space<vmem>>, vector<8x256xf32>
    %1 = vector.extract_strided_slice %0 {offsets = [0, 16], sizes = [8, 240], strides = [1, 1]} : vector<8x256xf32> to vector<8x240xf32>
    %2 = vector.extract_strided_slice %0 {offsets = [0, 0], sizes = [8, 16], strides = [1, 1]} : vector<8x256xf32> to vector<8x16xf32>
    %3 = tpu.concatenate %1, %2 in 1 : vector<8x240xf32>, vector<8x16xf32> -> vector<8x256xf32>
    %4 = arith.addf %0, %3 : vector<8x256xf32>
    %5 = arith.maximumf %0, %3 : vector<8x256xf32>
    %c0_1 = arith.constant 0 : index
    %c0_2 = arith.constant 0 : index
    %6 = vector.load %arg3[%c0_1, %c0_2] : memref<8x256xbf16, #tpu.memory_space<vmem>>, vector<8x256xbf16>
    %cst = arith.constant 0.000000e+00 : bf16
    %7 = vector.broadcast %cst : bf16 to vector<8x256xbf16>
    %8 = arith.cmpf one, %6, %7 : vector<8x256xbf16>
    %cst_3 = arith.constant 2.500000e-01 : f32
    %9 = vector.broadcast %cst_3 : f32 to vector<8x256xf32>
    %10 = arith.mulf %9, %4 : vector<8x256xf32>
    %11 = arith.select %8, %10, %5 : vector<8x256xi1>, vector<8x256xf32>
    %12 = vector.extract_strided_slice %11 {offsets = [0, 1], sizes = [8, 255], strides = [1, 1]} : vector<8x256xf32> to vector<8x255xf32>
    %13 = vector.extract_strided_slice %11 {offsets = [0, 0], sizes = [8, 1], strides = [1, 1]} : vector<8x256xf32> to vector<8x1xf32>
    %14 = tpu.concatenate %12, %13 in 1 : vector<8x255xf32>, vector<8x1xf32> -> vector<8x256xf32>
    %15 = arith.addf %11, %14 : vector<8x256xf32>
    %16 = arith.maximumf %11, %14 : vector<8x256xf32>
    %17 = arith.select %8, %15, %16 : vector<8x256xi1>, vector<8x256xf32>
    %c0_4 = arith.constant 0 : index
    %c0_5 = arith.constant 0 : index
    %18 = vector.load %arg2[%c0_4, %c0_5] : memref<256x64xbf16, #tpu.memory_space<vmem>>, vector<256x64xbf16>
    %19 = arith.truncf %17 : vector<8x256xf32> to vector<8x256xbf16>
    %cst_6 = arith.constant dense<0.000000e+00> : vector<8x64xf32>
    %20 = tpu.matmul %19, %18, %cst_6 {dimension_numbers = #tpu.dot_dimension_numbers<[1], [0], [0], [1], [0, 0, 1, 1], [], []>} : vector<8x256xbf16>, vector<256x64xbf16>, vector<8x64xf32> -> vector<8x64xf32>
    %21 = arith.extf %19 : vector<8x256xbf16> to vector<8x256xf32>
    %22 = arith.subf %17, %21 : vector<8x256xf32>
    %23 = arith.truncf %22 : vector<8x256xf32> to vector<8x256xbf16>
    %cst_7 = arith.constant dense<0.000000e+00> : vector<8x64xf32>
    %24 = tpu.matmul %23, %18, %cst_7 {dimension_numbers = #tpu.dot_dimension_numbers<[1], [0], [0], [1], [0, 0, 1, 1], [], []>} : vector<8x256xbf16>, vector<256x64xbf16>, vector<8x64xf32> -> vector<8x64xf32>
    %25 = arith.addf %20, %24 : vector<8x64xf32>
    %26 = arith.extf %23 : vector<8x256xbf16> to vector<8x256xf32>
    %27 = arith.subf %22, %26 : vector<8x256xf32>
    %28 = arith.truncf %27 : vector<8x256xf32> to vector<8x256xbf16>
    %cst_8 = arith.constant dense<0.000000e+00> : vector<8x64xf32>
    %29 = tpu.matmul %28, %18, %cst_8 {dimension_numbers = #tpu.dot_dimension_numbers<[1], [0], [0], [1], [0, 0, 1, 1], [], []>} : vector<8x256xbf16>, vector<256x64xbf16>, vector<8x64xf32> -> vector<8x64xf32>
    %30 = arith.addf %25, %29 : vector<8x64xf32>
    %c0_9 = arith.constant 0 : index
    %c0_10 = arith.constant 0 : index
    %31 = vector.load %arg4[%c0_9, %c0_10] : memref<8x64xf32, #tpu.memory_space<vmem>>, vector<8x64xf32>
    tpu.vector_store %arg4[%c0_9, %c0_10], %30 {strides = array<i32>} : memref<8x64xf32, #tpu.memory_space<vmem>>, vector<8x64xf32>,
    return
  }
  func.func @transform_0(%arg0: i32) -> (i32, i32) {
    %c0_i32 = arith.constant 0 : i32
    %c0_i32_0 = arith.constant 0 : i32
    return %arg0, %c0_i32 : i32, i32
  }
  func.func @transform_1(%arg0: i32) -> (i32, i32) {
    %c0_i32 = arith.constant 0 : i32
    %c0_i32_0 = arith.constant 0 : i32
    %c0_i32_1 = arith.constant 0 : i32
    return %c0_i32, %c0_i32_0 : i32, i32
  }
  func.func @transform_2(%arg0: i32) -> (i32, i32) {
    %c0_i32 = arith.constant 0 : i32
    %c0_i32_0 = arith.constant 0 : i32
    %c0_i32_1 = arith.constant 0 : i32
    return %c0_i32, %c0_i32_0 : i32, i32
  }
  func.func @transform_3(%arg0: i32) -> (i32, i32) {
    %c0_i32 = arith.constant 0 : i32
    %c0_i32_0 = arith.constant 0 : i32
    return %arg0, %c0_i32 : i32, i32
  }
}

</mosaic_0001>

<llo_original>
// kernel: tpu_custom_call.1
$region0: #{tpu_custom_call.1}
  #allocation0 [shape = 'u32[]', space=smem, size = 0x4, offset = 0x4, fixed_abs, tag = 'smem constant byte address 0x4 - core index']
  #allocation1 [shape = 'u32[144,128]{1,0:T(1,128)}', space=vmem, size = 0x12000, scoped, tag = 'internal scratch']
  %s0 = inlined_call_operand.vmem [shape: f32[8,256], index: 0, kind: input, shape index: {}]
  %s1 = inlined_call_operand.vmem [shape: bf16[256,64], index: 1, kind: input, shape index: {}]
  %s2 = inlined_call_operand.vmem [shape: bf16[8,256], index: 2, kind: input, shape index: {}]
  %s3 = inlined_call_operand.hbm [shape: f32[8,64], index: 3, kind: output, shape index: {}]
  %s4 = sld [smem:[#allocation0]]
  $region22: #{tpu_custom_call.1} parent=0
    _
  %s6 = ssub.s32 1, %s4
  %s7 = scalar_select 0, %s6, %s4
  $region1: #{tpu_custom_call.1} parent=0
    #allocation2 [shape = 'u8[4096]{0}', space=vmem, size = 0x1000, scoped, tag = 'output window, operand 0, single buffered']
    #allocation3 [shape = 's32[1]{0}', space=sflag, size = 0x4, scoped, tag = 'scoped memory for tpu_custom_call.1']
    %8 = vsyncpa [#allocation3], 0
    // Predicated region
    $region2: #{tpu_custom_call.1} parent=1 // pred_check
      _
    $region3: #{tpu_custom_call.1} parent=1 // pred_check_branch
      %10 = sbr.rel (0) target = $region5
    $region4: #{tpu_custom_call.1} parent=1 // pred_region
      _
    $region5: #{tpu_custom_call.1} parent=1 // pred_fallthru
      _
    // Predicated region
    $region6: #{tpu_custom_call.1} parent=1 // pred_check
      _
    $region7: #{tpu_custom_call.1} parent=1 // pred_check_branch
      %12 = sbr.rel (0) target = $region9
    $region8: #{tpu_custom_call.1} parent=1 // pred_region
      _
    $region9: #{tpu_custom_call.1} parent=1 // pred_fallthru
      _
    // Predicated region
    $region10: #{tpu_custom_call.1} parent=1 // pred_check
      _
    $region11: #{tpu_custom_call.1} parent=1 // pred_check_branch
      %14 = sbr.rel (0) target = $region13
    $region12: #{tpu_custom_call.1} parent=1 // pred_region
      _
    $region13: #{tpu_custom_call.1} parent=1 // pred_fallthru
      _
    %v18 = vld [vmem:[%s0] sm:$0xff]
    %v19 = vld [vmem:[%s0 + $0x8] sm:$0xff]
    %22 = vrot.lane.b32.xlu0 %v18, 112
    %v23 = vpop.permute.xlu0 %22
    %24 = vrot.lane.b32.xlu0 %v19, 112
    %v25 = vpop.permute.xlu0 %24
    %vm26 = vcmask 916480
    %v27 = vsel %vm26, %v23, %v25
    %v31 = vsel %vm26, %v25, %v23
    %v32 = vadd.f32 %v18, %v27
    %v33 = vadd.f32 %v19, %v31
    %v34 = vmax.f32 %v18, %v27
    %v35 = vmax.f32 %v19, %v31
    %v36 = vld [vmem:[%s2] sm:$0xff]
    %vm37 = vcmp.ne.bf16.partialorder %v36, 0
    %v38 = vmul.f32 %v32, 0.25
    %v39 = vmul.f32 %v33, 0.25
    %v40 = vsel %vm37, 65537, 0
    %v41 = vunpack.c.l.b16 %v40
    %v42 = vunpack.c.h.b16 %v40
    %vm43 = vcmp.ne.s32.totalorder %v41, 0
    %vm44 = vcmp.ne.s32.totalorder %v42, 0
    %v45 = vsel %vm43, %v38, %v34
    %v46 = vsel %vm44, %v39, %v35
    %49 = vrot.lane.b32.xlu0 %v45, 127
    %v50 = vpop.permute.xlu0 %49
    %51 = vrot.lane.b32.xlu0 %v46, 127
    %v52 = vpop.permute.xlu0 %51
    %vm53 = vcmask 1039360
    %v54 = vsel %vm53, %v50, %v52
    %v58 = vsel %vm53, %v52, %v50
    %v59 = vadd.f32 %v45, %v54
    %v60 = vadd.f32 %v46, %v58
    %v61 = vmax.f32 %v45, %v54
    %v62 = vmax.f32 %v46, %v58
    %v63 = vsel %vm43, %v59, %v61
    %v64 = vsel %vm44, %v60, %v62
    %v65 = vld [vmem:[%s1] sm:$0xf]
    %v66 = vld [vmem:[%s1 + $0x4] sm:$0xf]
    %v67 = vld [vmem:[%s1 + $0x8] sm:$0xf]
    %v68 = vld [vmem:[%s1 + $0xc] sm:$0xf]
    %v69 = vld [vmem:[%s1 + $0x10] sm:$0xf]
    %v70 = vld [vmem:[%s1 + $0x14] sm:$0xf]
    %v71 = vld [vmem:[%s1 + $0x18] sm:$0xf]
    %v72 = vld [vmem:[%s1 + $0x1c] sm:$0xf]
    %v73 = vld [vmem:[%s1 + $0x20] sm:$0xf]
    %v74 = vld [vmem:[%s1 + $0x24] sm:$0xf]
    %v75 = vld [vmem:[%s1 + $0x28] sm:$0xf]
    %v76 = vld [vmem:[%s1 + $0x2c] sm:$0xf]
    %v77 = vld [vmem:[%s1 + $0x30] sm:$0xf]
    %v78 = vld [vmem:[%s1 + $0x34] sm:$0xf]
    %v79 = vld [vmem:[%s1 + $0x38] sm:$0xf]
    %v80 = vld [vmem:[%s1 + $0x3c] sm:$0xf]
    %v81 = vld [vmem:[%s1 + $0x40] sm:$0xf]
    %v82 = vld [vmem:[%s1 + $0x44] sm:$0xf]
    %v83 = vld [vmem:[%s1 + $0x48] sm:$0xf]
    %v84 = vld [vmem:[%s1 + $0x4c] sm:$0xf]
    %v85 = vld [vmem:[%s1 + $0x50] sm:$0xf]
    %v86 = vld [vmem:[%s1 + $0x54] sm:$0xf]
    %v87 = vld [vmem:[%s1 + $0x58] sm:$0xf]
    %v88 = vld [vmem:[%s1 + $0x5c] sm:$0xf]
    %v89 = vld [vmem:[%s1 + $0x60] sm:$0xf]
    %v90 = vld [vmem:[%s1 + $0x64] sm:$0xf]
    %v91 = vld [vmem:[%s1 + $0x68] sm:$0xf]
    %v92 = vld [vmem:[%s1 + $0x6c] sm:$0xf]
    %v93 = vld [vmem:[%s1 + $0x70] sm:$0xf]
    %v94 = vld [vmem:[%s1 + $0x74] sm:$0xf]
    %v95 = vld [vmem:[%s1 + $0x78] sm:$0xf]
    %v96 = vld [vmem:[%s1 + $0x7c] sm:$0xf]
    %v97 = vpack.c.bf16 %v63, %v63
    %v98 = vpack.c.bf16 %v64, %v64
    %v99 = vunpack.c.l.bf16 %v97
    %v100 = vunpack.c.l.bf16 %v98
    %v101 = vsub.f32 %v63, %v99
    %v102 = vsub.f32 %v64, %v100
    %v103 = vpack.c.bf16 %v101, %v101
    %v104 = vpack.c.bf16 %v102, %v102
    %v137 = vunpack.c.l.b16 %v65
    %v138 = vunpack.c.l.b16 %v66
    %v139 = vunpack.c.l.b16 %v67
    %v140 = vunpack.c.l.b16 %v68
    %v141 = vunpack.c.l.b16 %v69
    %v142 = vunpack.c.l.b16 %v70
    %v143 = vunpack.c.l.b16 %v71
    %v144 = vunpack.c.l.b16 %v72
    %v145 = vunpack.c.l.b16 %v73
    %v146 = vunpack.c.l.b16 %v74
    %v147 = vunpack.c.l.b16 %v75
    %v148 = vunpack.c.l.b16 %v76
    %v149 = vunpack.c.l.b16 %v77
    %v150 = vunpack.c.l.b16 %v78
    %v151 = vunpack.c.l.b16 %v79
    %v152 = vunpack.c.l.b16 %v80
    %v153 = vunpack.c.l.b16 %v81
    %v154 = vunpack.c.l.b16 %v82
    %v155 = vunpack.c.l.b16 %v83
    %v156 = vunpack.c.l.b16 %v84
    %v157 = vunpack.c.l.b16 %v85
    %v158 = vunpack.c.l.b16 %v86
    %v159 = vunpack.c.l.b16 %v87
    %v160 = vunpack.c.l.b16 %v88
    %v161 = vunpack.c.l.b16 %v89
    %v162 = vunpack.c.l.b16 %v90
    %v163 = vunpack.c.l.b16 %v91
    %v164 = vunpack.c.l.b16 %v92
    %v165 = vunpack.c.l.b16 %v93
    %v166 = vunpack.c.l.b16 %v94
    %v167 = vunpack.c.l.b16 %v95
    %v168 = vunpack.c.l.b16 %v96
    %v169 = vpack.c.b16 %v138, %v137
    %v170 = vpack.c.b16 %v140, %v139
    %v171 = vpack.c.b16 %v142, %v141
    %v172 = vpack.c.b16 %v144, %v143
    %v173 = vpack.c.b16 %v146, %v145
    %v174 = vpack.c.b16 %v148, %v147
    %v175 = vpack.c.b16 %v150, %v149
    %v176 = vpack.c.b16 %v152, %v151
    %v177 = vpack.c.b16 %v154, %v153
    %v178 = vpack.c.b16 %v156, %v155
    %v179 = vpack.c.b16 %v158, %v157
    %v180 = vpack.c.b16 %v160, %v159
    %v181 = vpack.c.b16 %v162, %v161
    %v182 = vpack.c.b16 %v164, %v163
    %v183 = vpack.c.b16 %v166, %v165
    %v184 = vpack.c.b16 %v168, %v167
    %201 = vmatprep.subr.bf16.mxu0 0
    %202 = vmatpush1.bf16.msra.mxu0 %v169
    %203 = vmatprep.subr.bf16.mxu0 0
    %204 = vmatpush1.bf16.msra.mxu0 %v170
    %205 = vmatprep.subr.bf16.mxu0 0
    %206 = vmatpush1.bf16.msra.mxu0 %v171
    %207 = vmatprep.subr.bf16.mxu0 0
    %208 = vmatpush1.bf16.msra.mxu0 %v172
    %209 = vmatprep.subr.bf16.mxu0 0
    %210 = vmatpush1.bf16.msra.mxu0 %v173
    %211 = vmatprep.subr.bf16.mxu0 0
    %212 = vmatpush1.bf16.msra.mxu0 %v174
    %213 = vmatprep.subr.bf16.mxu0 0
    %214 = vmatpush1.bf16.msra.mxu0 %v175
    %215 = vmatprep.subr.bf16.mxu0 0
    %216 = vmatpush1.bf16.msra.mxu0 %v176
    %217 = vmatprep.subr.bf16.mxu0 0
    %218 = vmatpush1.bf16.msra.mxu0 %v177
    %219 = vmatprep.subr.bf16.mxu0 0
    %220 = vmatpush1.bf16.msra.mxu0 %v178
    %221 = vmatprep.subr.bf16.mxu0 0
    %222 = vmatpush1.bf16.msra.mxu0 %v179
    %223 = vmatprep.subr.bf16.mxu0 0
    %224 = vmatpush1.bf16.msra.mxu0 %v180
    %225 = vmatprep.subr.bf16.mxu0 0
    %226 = vmatpush1.bf16.msra.mxu0 %v181
    %227 = vmatprep.subr.bf16.mxu0 0
    %228 = vmatpush1.bf16.msra.mxu0 %v182
    %229 = vmatprep.subr.bf16.mxu0 0
    %230 = vmatpush1.bf16.msra.mxu0 %v183
    %231 = vmatprep.subr.bf16.mxu0 0
    %232 = vmatpush1.bf16.msra.mxu0 %v184
    %233 = vmatprep.mubr.bf16.mxu0 %v104
    %234 = vmatmul.mubr.bf16.gmra.mrb[0].mxu0 %v103
    %v235 = vpop.f32.mrb[0].mxu0
    %v236 = vadd.f32 0.0, %v235
    %v237 = vpop.f32.mrb[0].mxu0
    %v238 = vpop.f32.mrb[0].mxu0
    %v239 = vpop.f32.mrb[0].mxu0
    %240 = vdwg.mxu0
    %241 = vmatprep.subr.bf16.mxu0 0
    %242 = vmatpush1.bf16.msra.mxu0 %v169
    %243 = vmatprep.subr.bf16.mxu0 0
    %244 = vmatpush1.bf16.msra.mxu0 %v170
    %245 = vmatprep.subr.bf16.mxu0 0
    %246 = vmatpush1.bf16.msra.mxu0 %v171
    %247 = vmatprep.subr.bf16.mxu0 0
    %248 = vmatpush1.bf16.msra.mxu0 %v172
    %249 = vmatprep.subr.bf16.mxu0 0
    %250 = vmatpush1.bf16.msra.mxu0 %v173
    %251 = vmatprep.subr.bf16.mxu0 0
    %252 = vmatpush1.bf16.msra.mxu0 %v174
    %253 = vmatprep.subr.bf16.mxu0 0
    %254 = vmatpush1.bf16.msra.mxu0 %v175
    %255 = vmatprep.subr.bf16.mxu0 0
    %256 = vmatpush1.bf16.msra.mxu0 %v176
    %257 = vmatprep.subr.bf16.mxu0 0
    %258 = vmatpush1.bf16.msra.mxu0 %v177
    %259 = vmatprep.subr.bf16.mxu0 0
    %260 = vmatpush1.bf16.msra.mxu0 %v178
    %261 = vmatprep.subr.bf16.mxu0 0
    %262 = vmatpush1.bf16.msra.mxu0 %v179
    %263 = vmatprep.subr.bf16.mxu0 0
    %264 = vmatpush1.bf16.msra.mxu0 %v180
    %265 = vmatprep.subr.bf16.mxu0 0
    %266 = vmatpush1.bf16.msra.mxu0 %v181
    %267 = vmatprep.subr.bf16.mxu0 0
    %268 = vmatpush1.bf16.msra.mxu0 %v182
    %269 = vmatprep.subr.bf16.mxu0 0
    %270 = vmatpush1.bf16.msra.mxu0 %v183
    %271 = vmatprep.subr.bf16.mxu0 0
    %272 = vmatpush1.bf16.msra.mxu0 %v184
    %273 = vmatprep.mubr.bf16.mxu0 %v98
    %274 = vmatmul.mubr.bf16.gmra.mrb[0].mxu0 %v97
    %v275 = vpop.f32.mrb[0].mxu0
    %v276 = vadd.f32 %v236, %v275
    %v277 = vpop.f32.mrb[0].mxu0
    %v278 = vpop.f32.mrb[0].mxu0
    %v279 = vpop.f32.mrb[0].mxu0
    %280 = vdwg.mxu0
    %v281 = vunpack.c.l.bf16 %v103
    %v282 = vunpack.c.l.bf16 %v104
    %v283 = vsub.f32 %v101, %v281
    %v284 = vsub.f32 %v102, %v282
    %v285 = vpack.c.bf16 %v283, %v283
    %v286 = vpack.c.bf16 %v284, %v284
    %287 = vmatprep.subr.bf16.mxu0 0
    %288 = vmatpush1.bf16.msra.mxu0 %v169
    %289 = vmatprep.subr.bf16.mxu0 0
    %290 = vmatpush1.bf16.msra.mxu0 %v170
    %291 = vmatprep.subr.bf16.mxu0 0
    %292 = vmatpush1.bf16.msra.mxu0 %v171
    %293 = vmatprep.subr.bf16.mxu0 0
    %294 = vmatpush1.bf16.msra.mxu0 %v172
    %295 = vmatprep.subr.bf16.mxu0 0
    %296 = vmatpush1.bf16.msra.mxu0 %v173
    %297 = vmatprep.subr.bf16.mxu0 0
    %298 = vmatpush1.bf16.msra.mxu0 %v174
    %299 = vmatprep.subr.bf16.mxu0 0
    %300 = vmatpush1.bf16.msra.mxu0 %v175
    %301 = vmatprep.subr.bf16.mxu0 0
    %302 = vmatpush1.bf16.msra.mxu0 %v176
    %303 = vmatprep.subr.bf16.mxu0 0
    %304 = vmatpush1.bf16.msra.mxu0 %v177
    %305 = vmatprep.subr.bf16.mxu0 0
    %306 = vmatpush1.bf16.msra.mxu0 %v178
    %307 = vmatprep.subr.bf16.mxu0 0
    %308 = vmatpush1.bf16.msra.mxu0 %v179
    %309 = vmatprep.subr.bf16.mxu0 0
    %310 = vmatpush1.bf16.msra.mxu0 %v180
    %311 = vmatprep.subr.bf16.mxu0 0
    %312 = vmatpush1.bf16.msra.mxu0 %v181
    %313 = vmatprep.subr.bf16.mxu0 0
    %314 = vmatpush1.bf16.msra.mxu0 %v182
    %315 = vmatprep.subr.bf16.mxu0 0
    %316 = vmatpush1.bf16.msra.mxu0 %v183
    %317 = vmatprep.subr.bf16.mxu0 0
    %318 = vmatpush1.bf16.msra.mxu0 %v184
    %319 = vmatprep.mubr.bf16.mxu0 %v286
    %320 = vmatmul.mubr.bf16.gmra.mrb[0].mxu0 %v285
    %v321 = vpop.f32.mrb[0].mxu0
    %v322 = vadd.f32 0.0, %v321
    %v323 = vpop.f32.mrb[0].mxu0
    %v324 = vpop.f32.mrb[0].mxu0
    %v325 = vpop.f32.mrb[0].mxu0
    %326 = vdwg.mxu0
    %v327 = vadd.f32 %v276, %v322
    %vm328 = vcmask 523264
    %329 = vst.msk [vmem:[#allocation2] sm:$0xff] %vm328, %v327
    // Predicated region
    $region14: #{tpu_custom_call.1} parent=1 // pred_check
      _
    $region15: #{tpu_custom_call.1} parent=1 // pred_check_branch
      %331 = sbr.rel (0) target = $region17
    $region16: #{tpu_custom_call.1} parent=1 // pred_region
      %s333 = ssub.s32 128, 128
      %334 = vsyncadd [#allocation3], %s333
      %s336 = sshll.u32 [#allocation2], 4
      %s337 = int_to_ptr.vmem [resolvable:$true] %s336
      %339 = dma.vmem_to_hbm [thread:$0]  %s337, 128, %s3, [#allocation3]
    $region17: #{tpu_custom_call.1} parent=1 // pred_fallthru
      _
    // Predicated region
    $region18: #{tpu_custom_call.1} parent=1 // pred_check
      _
    $region19: #{tpu_custom_call.1} parent=1 // pred_check_branch
      %341 = sbr.rel (0) target = $region21
    $region20: #{tpu_custom_call.1} parent=1 // pred_region
      %342 = dma.done [#allocation3], 128
    $region21: #{tpu_custom_call.1} parent=1 // pred_fallthru
      _
    %343 = vsyncpa [#allocation3], 1

</llo_original>
